<compile_context>
chip_gen: v7x
topology: tpu7x:2x2x1
jax: 0.10.0
libtpu: 0.0.40
codegen_flags: <defaults>
</compile_context>

<pallas_src>
import jax
import jax.numpy as jnp
from jax import lax
from jax.experimental import pallas as pl
from jax.experimental.pallas import tpu as pltpu

NUM_CLASSES = 2            # forward indexes logits [:, 0] and [:, 1]
HIDDEN = 32
H2 = 2 * HIDDEN            # both heads' hidden units, fused
OUT_PAD = 128              # lane-dense padded classifier width

TILE_VMEM_BUDGET = 16 * 1024 * 1024    # per-step tile budget (v7x-safe)
TARGET_BLOCK_BYTES = 1 << 20           # aim for ~1 MiB streamed x per step


# ----------------------------------------------------------------------------
# Tile heuristics
# ----------------------------------------------------------------------------
def _choose_spatial_tile(c, s, itemsize, budget=TILE_VMEM_BUDGET):
    """Largest lane-dense (multiple-of-128) spatial tile that fits the budget."""
    if s < 128:
        return s                                   # tiny S: full (ragged) tile
    # keep the double-buffered (C, TS) x slab at <= half the tile budget
    cap = max(128, (budget // (4 * c * itemsize)) // 128 * 128)
    if s % 128 == 0:
        ts = 128
        while ts * 2 <= min(s, cap) and s % (ts * 2) == 0:
            ts *= 2
        return ts
    return min((s // 128) * 128, cap)              # ragged tail handled by mask


def _choose_chunk(ts):
    """Inner lane chunk: bounds the f32 (2H, chunk) activation (it is 2H/C x
    larger than the streamed x chunk, so it, not x, blows VMEM at big TS)."""
    if ts % 128 != 0:
        return ts
    for cand in (512, 256, 128):
        if ts % cand == 0:
            return cand
    return 128


def _choose_batch_tile(n, c, ts, acc_w, itemsize,
                       target=TARGET_BLOCK_BYTES, budget=TILE_VMEM_BUDGET):
    """Block several samples per grid step when single-sample blocks are tiny,
    but keep >= 2 batch grid steps (v7x megacore) and stay inside the budget."""
    max_tn = max(1, n // 2)

    def vmem_ok(t):
        x_db = 2 * t * c * ts * itemsize           # double-buffered x stream
        acc = t * H2 * acc_w * 4                   # persistent accumulator
        out_db = 2 * t * 8 * OUT_PAD * 4           # padded output block
        return x_db + acc + out_db <= budget

    tn = 1
    while (tn * 2 <= max_tn and n % (tn * 2) == 0
           and tn * c * ts * itemsize < target and vmem_ok(tn * 2)):
        tn *= 2
    return tn


# ----------------------------------------------------------------------------
# Parameters for the synthetic stand-in heads
# ----------------------------------------------------------------------------
def init_params(key, c_in):
    ks = jax.random.split(key, 8)

    def lin(k, fi, fo):
        return (jax.random.normal(k, (fi, fo), jnp.float32) / jnp.sqrt(fi)).astype(jnp.float32)

    return {
        "w1c": lin(ks[0], c_in, HIDDEN),
        "b1c": 0.01 * jax.random.normal(ks[1], (1, HIDDEN), jnp.float32),
        "w2c": lin(ks[2], HIDDEN, NUM_CLASSES),
        "b2c": 0.01 * jax.random.normal(ks[3], (1, NUM_CLASSES), jnp.float32),
        "w1i": lin(ks[4], c_in, HIDDEN),
        "b1i": 0.01 * jax.random.normal(ks[5], (1, HIDDEN), jnp.float32),
        "w2i": lin(ks[6], HIDDEN, NUM_CLASSES),
        "b2i": 0.01 * jax.random.normal(ks[7], (1, NUM_CLASSES), jnp.float32),
    }


# ----------------------------------------------------------------------------
# Fused FusionNet forward
# ----------------------------------------------------------------------------
def fusion_net(x_nchw, params, *, spatial_tile=None, batch_tile=None,
               stream_dtype=None, vmem_limit_bytes=48 * 1024 * 1024):
    # TODO(synk): the real ResNet50v2 backbones + .ckp checkpoint weights are
    # not translatable in-script; synthetic stand-in heads are used instead.
    N, C, H, W = x_nchw.shape
    S = H * W
    sdt = jnp.dtype(stream_dtype) if stream_dtype is not None else x_nchw.dtype
    x = x_nchw.reshape(N, C, S).astype(sdt)        # pure reshape: spatial on lanes
    # TODO(synk): this layout assumes S >> C (early feature maps); a C >> S head
    # (ResNet final stage C=2048, S=49) would want channels on lanes instead.

    itemsize = jnp.dtype(sdt).itemsize

    # --- tiling --------------------------------------------------------------
    TS = int(spatial_tile) if spatial_tile is not None else _choose_spatial_tile(C, S, itemsize)
    assert 0 < TS <= S and (TS % 128 == 0 or TS == S), (S, TS)
    CHUNK = _choose_chunk(TS)
    n_chunks = TS // CHUNK
    ACC_W = 128 if CHUNK % 128 == 0 else CHUNK
    TN = int(batch_tile) if batch_tile is not None else _choose_batch_tile(N, C, TS, ACC_W, itemsize)
    assert N % TN == 0, (N, TN)
    n_s = pl.cdiv(S, TS)
    needs_mask = (S % TS) != 0
    unroll = n_chunks <= 16

    # --- fused / mask-folded weights (wrapper side) --------------------------
    inv_s = 1.0 / float(S)
    # Both heads' first layers fused into one (2H, C) weight, (2H, 1) bias.
    w1f = jnp.concatenate([params["w1c"], params["w1i"]], axis=1).T.astype(sdt)
    b1f = jnp.concatenate([params["b1c"], params["b1i"]], axis=1).reshape(H2, 1)
    b1f = b1f.astype(jnp.float32)
    # Class masking (y_c[:,1]=0, y_i[:,0]=0) folded into a lane-padded fused
    # classifier; the 1/S of the global-average-pool is folded in as well.
    w2f = jnp.zeros((H2, OUT_PAD), jnp.float32)
    w2f = w2f.at[:HIDDEN, 0].set(params["w2c"][:, 0])
    w2f = w2f.at[HIDDEN:, 1].set(params["w2i"][:, 1])
    w2f = w2f * inv_s
    b2f = jnp.zeros((1, OUT_PAD), jnp.float32)
    b2f = b2f.at[0, 0].set(params["b2c"][0, 0])
    b2f = b2f.at[0, 1].set(params["b2i"][0, 1])

    # --- kernel --------------------------------------------------------------
    def kernel(x_ref, w1_ref, b1_ref, w2_ref, b2_ref, out_ref, acc_ref):
        s_idx = pl.program_id(1)

        @pl.when(s_idx == 0)
        def _init():
            acc_ref[...] = jnp.zeros_like(acc_ref)

        w1 = w1_ref[...]                       # (2H, C) resident
        b1 = b1_ref[...]                       # (2H, 1)
        col0 = s_idx * TS                      # global spatial offset of this tile

        for n_local in range(TN):              # static, small batch block
            def chunk_body(c, acc):
                if n_chunks == 1:
                    off = 0
                    xt = x_ref[n_local]                               # (C, TS)
                else:
                    off = pl.multiple_of(c * CHUNK, CHUNK)
                    xt = x_ref[n_local, :, pl.ds(off, CHUNK)]         # (C, CHUNK)
                # 1x1 conv over channels == (2H,C)@(C,CHUNK) matmul, f32 acc.
                # (MXU path; for C<=8 on v5e a VPU-FMA expansion is possible,
                #  but the kernel is memory-bound so it is left on the MXU.)
                h = jnp.dot(w1, xt, preferred_element_type=jnp.float32)
                h = jnp.maximum(h + b1, 0.0)                          # bias + ReLU
                if needs_mask:
                    # Ragged S: padded columns would contribute max(b1,0), so
                    # mask h (not just x) before accumulating.
                    lane = lax.broadcasted_iota(jnp.int32, h.shape, 1)
                    h = jnp.where(col0 + off + lane < S, h, 0.0)
                # Fold CHUNK lanes -> ACC_W lanes with pure VALU vreg adds; the
                # single cross-lane (XLU) reduce is deferred to the epilogue.
                p = h[:, 0:ACC_W]
                for j in range(1, CHUNK // ACC_W):
                    p = p + h[:, j * ACC_W:(j + 1) * ACC_W]
                return acc + p

            part = lax.fori_loop(0, n_chunks, chunk_body,
                                 jnp.zeros((H2, ACC_W), jnp.float32),
                                 unroll=unroll)
            acc_ref[n_local] += part

        @pl.when(s_idx == n_s - 1)
        def _finalize():
            w2 = w2_ref[...]                   # (2H, OUT_PAD), mask + 1/S folded
            b2 = b2_ref[...]                   # (1, OUT_PAD)
            for n_local in range(TN):
                pooled = jnp.sum(acc_ref[n_local], axis=1, keepdims=True)   # (2H,1)
                y = jnp.sum(pooled * w2, axis=0, keepdims=True) + b2        # (1,OUT_PAD)
                out_ref[n_local] = jnp.broadcast_to(y, (8, OUT_PAD)).astype(out_ref.dtype)

    out_padded = pl.pallas_call(
        kernel,
        out_shape=jax.ShapeDtypeStruct((N, 8, OUT_PAD), jnp.float32),
        grid=(N // TN, n_s),
        in_specs=[
            pl.BlockSpec((TN, C, TS), lambda nb, s: (nb, 0, s)),   # streamed x
            pl.BlockSpec((H2, C), lambda nb, s: (0, 0)),           # fused w1 (resident)
            pl.BlockSpec((H2, 1), lambda nb, s: (0, 0)),           # fused b1
            pl.BlockSpec((H2, OUT_PAD), lambda nb, s: (0, 0)),     # fused, folded w2
            pl.BlockSpec((1, OUT_PAD), lambda nb, s: (0, 0)),      # fused b2
        ],
        out_specs=pl.BlockSpec((TN, 8, OUT_PAD), lambda nb, s: (nb, 0, 0)),
        scratch_shapes=[pltpu.VMEM((TN, H2, ACC_W), jnp.float32)],  # pooled acc
        compiler_params=pltpu.CompilerParams(
            dimension_semantics=("parallel", "arbitrary"),
            vmem_limit_bytes=vmem_limit_bytes,
        ),
    )(x, w1f, b1f, w2f, b2f)

    return out_padded[:, 0, :NUM_CLASSES]


# ----------------------------------------------------------------------------
# Pure-JAX reference with the original (unfused) semantics
# ----------------------------------------------------------------------------
def fusion_net_ref(x_nchw, params):
    N, C, H, W = x_nchw.shape
    x = jnp.transpose(x_nchw, (0, 2, 3, 1)).reshape(N, H * W, C).astype(jnp.float32)

    def head(w1, b1, w2, b2):
        h = jnp.maximum(jnp.einsum("nsc,ch->nsh", x, w1) + b1[None], 0.0)
        pooled = jnp.mean(h, axis=1)
        return pooled @ w2 + b2

    y_c = head(params["w1c"], params["b1c"], params["w2c"], params["b2c"])
    y_i = head(params["w1i"], params["b1i"], params["w2i"], params["b2i"])
    y_c = y_c.at[:, 1].set(0.0)
    y_i = y_i.at[:, 0].set(0.0)
    return y_c + y_i


if __name__ == "__main__":
    key = jax.random.PRNGKey(0)
    k_x, k_p, k_x2 = jax.random.split(key, 3)

    N, C, H, W = 2, 4, 16, 16
    x = jax.random.normal(k_x, (N, C, H, W), jnp.float32)
    params = init_params(k_p, C)
    ref = fusion_net_ref(x, params)

    # 1) explicit small spatial tile -> multi-step spatial reduction path
    out1 = jax.block_until_ready(fusion_net(x, params, spatial_tile=128))
    assert out1.shape == (N, NUM_CLASSES)
    assert jnp.allclose(out1, ref, atol=1e-4, rtol=1e-4), (out1, ref)

    # 2) auto tiling (full-S lane-dense tile, single reduction step)
    out2 = jax.block_until_ready(fusion_net(x, params))
    assert jnp.allclose(out2, ref, atol=1e-4, rtol=1e-4), (out2, ref)

    # 3) ragged spatial extent (S=200) -> masked partial last tile
    x2 = jax.random.normal(k_x2, (N, C, 10, 20), jnp.float32)
    ref2 = fusion_net_ref(x2, params)
    out3 = jax.block_until_ready(fusion_net(x2, params))
    assert out3.shape == (N, NUM_CLASSES)
    assert jnp.allclose(out3, ref2, atol=1e-4, rtol=1e-4), (out3, ref2)

    print("KERNEL_OK")
</pallas_src>

<mosaic_0001>
module attributes {stable_mosaic.version = 11 : i64} {
  func.func @kernel(%arg0: i32, %arg1: i32, %arg2: memref<1x4x128xf32, #tpu.memory_space<vmem>>, %arg3: memref<64x4xf32, #tpu.memory_space<vmem>>, %arg4: memref<64x1xf32, #tpu.memory_space<vmem>>, %arg5: memref<64x128xf32, #tpu.memory_space<vmem>>, %arg6: memref<1x128xf32, #tpu.memory_space<vmem>>, %arg7: memref<1x8x128xf32, #tpu.memory_space<vmem>>, %arg8: memref<1x64x128xf32, #tpu.memory_space<vmem>>) attributes {dimension_semantics = [#tpu.dimension_semantics<parallel>, #tpu.dimension_semantics<arbitrary>], iteration_bounds = array<i64: 2, 2>, scalar_prefetch = 0 : i64, scratch_operands = 1 : i64, tpu.core_type = #tpu.core_type<tc>, window_params = [{transform_indices = @transform_0, window_bounds = array<i64: 1, 4, 128>}, {pipeline_mode = #tpu.pipeline_mode<synchronous>, transform_indices = @transform_1, window_bounds = array<i64: 64, 4>}, {pipeline_mode = #tpu.pipeline_mode<synchronous>, transform_indices = @transform_2, window_bounds = array<i64: 64, 1>}, {pipeline_mode = #tpu.pipeline_mode<synchronous>, transform_indices = @transform_3, window_bounds = array<i64: 64, 128>}, {pipeline_mode = #tpu.pipeline_mode<synchronous>, transform_indices = @transform_4, window_bounds = array<i64: 1, 128>}, {transform_indices = @transform_5, window_bounds = array<i64: 1, 8, 128>}]} {
    %c0_i32 = arith.constant 0 : i32
    %0 = arith.cmpi eq, %arg1, %c0_i32 : i32
    %1 = arith.extui %0 : i1 to i32
    %c0_i32_0 = arith.constant 0 : i32
    %2 = arith.cmpi ne, %1, %c0_i32_0 : i32
    scf.if %2 {
      %cst_17 = arith.constant 0.000000e+00 : f32
      %23 = vector.broadcast %cst_17 : f32 to vector<1x64x128xf32>
      %c0_18 = arith.constant 0 : index
      %c0_19 = arith.constant 0 : index
      %c0_20 = arith.constant 0 : index
      %24 = vector.load %arg8[%c0_18, %c0_19, %c0_20] : memref<1x64x128xf32, #tpu.memory_space<vmem>>, vector<1x64x128xf32>
      tpu.vector_store %arg8[%c0_18, %c0_19, %c0_20], %23 {strides = array<i32>} : memref<1x64x128xf32, #tpu.memory_space<vmem>>, vector<1x64x128xf32>,
    } else {
    }
    %c0 = arith.constant 0 : index
    %c0_1 = arith.constant 0 : index
    %3 = vector.load %arg3[%c0, %c0_1] : memref<64x4xf32, #tpu.memory_space<vmem>>, vector<64x4xf32>
    %c0_2 = arith.constant 0 : index
    %c0_3 = arith.constant 0 : index
    %4 = vector.load %arg4[%c0_2, %c0_3] : memref<64x1xf32, #tpu.memory_space<vmem>>, vector<64x1xf32>
    %cst = arith.constant 0.000000e+00 : f32
    %5 = vector.broadcast %cst : f32 to vector<64x128xf32>
    %c0_i32_4 = arith.constant 0 : i32
    %c0_5 = arith.constant 0 : index
    %c0_6 = arith.constant 0 : index
    %c0_7 = arith.constant 0 : index
    %6 = vector.load %arg2[%c0_5, %c0_6, %c0_7] : memref<1x4x128xf32, #tpu.memory_space<vmem>>, vector<1x4x128xf32>
    %7 = vector.shape_cast %6 : vector<1x4x128xf32> to vector<4x128xf32>
    %cst_8 = arith.constant dense<0.000000e+00> : vector<64x128xf32>
    %8 = tpu.matmul %3, %7, %cst_8 {dimension_numbers = #tpu.dot_dimension_numbers<[1], [0], [0], [1], [0, 0, 1, 1], [], []>} : vector<64x4xf32>, vector<4x128xf32>, vector<64x128xf32> -> vector<64x128xf32>
    %9 = vector.broadcast %4 : vector<64x1xf32> to vector<64x128xf32>
    %10 = arith.addf %8, %9 : vector<64x128xf32>
    %cst_9 = arith.constant 0.000000e+00 : f32
    %11 = vector.broadcast %cst_9 : f32 to vector<64x128xf32>
    %12 = arith.maximumf %10, %11 : vector<64x128xf32>
    %13 = arith.addf %5, %12 : vector<64x128xf32>
    %c0_10 = arith.constant 0 : index
    %c0_11 = arith.constant 0 : index
    %c0_12 = arith.constant 0 : index
    %14 = vector.load %arg8[%c0_10, %c0_11, %c0_12] : memref<1x64x128xf32, #tpu.memory_space<vmem>>, vector<1x64x128xf32>
    %15 = vector.shape_cast %14 : vector<1x64x128xf32> to vector<64x128xf32>
    %16 = arith.addf %15, %13 : vector<64x128xf32>
    %c0_13 = arith.constant 0 : index
    %c0_14 = arith.constant 0 : index
    %c0_15 = arith.constant 0 : index
    %17 = vector.load %arg8[%c0_13, %c0_14, %c0_15] : memref<1x64x128xf32, #tpu.memory_space<vmem>>, vector<1x64x128xf32>
    %18 = vector.shape_cast %17 : vector<1x64x128xf32> to vector<64x128xf32>
    %19 = vector.shape_cast %16 : vector<64x128xf32> to vector<1x64x128xf32>
    tpu.vector_store %arg8[%c0_13, %c0_14, %c0_15], %19 {strides = array<i32>} : memref<1x64x128xf32, #tpu.memory_space<vmem>>, vector<1x64x128xf32>,
    %c1_i32 = arith.constant 1 : i32
    %20 = arith.cmpi eq, %arg1, %c1_i32 : i32
    %21 = arith.extui %20 : i1 to i32
    %c0_i32_16 = arith.constant 0 : i32
    %22 = arith.cmpi ne, %21, %c0_i32_16 : i32
    scf.if %22 {
      %c0_17 = arith.constant 0 : index
      %c0_18 = arith.constant 0 : index
      %23 = vector.load %arg5[%c0_17, %c0_18] : memref<64x128xf32, #tpu.memory_space<vmem>>, vector<64x128xf32>
      %c0_19 = arith.constant 0 : index
      %c0_20 = arith.constant 0 : index
      %24 = vector.load %arg6[%c0_19, %c0_20] : memref<1x128xf32, #tpu.memory_space<vmem>>, vector<1x128xf32>
      %c0_21 = arith.constant 0 : index
      %c0_22 = arith.constant 0 : index
      %c0_23 = arith.constant 0 : index
      %25 = vector.load %arg8[%c0_21, %c0_22, %c0_23] : memref<1x64x128xf32, #tpu.memory_space<vmem>>, vector<1x64x128xf32>
      %26 = vector.shape_cast %25 : vector<1x64x128xf32> to vector<64x128xf32>
      %cst_24 = arith.constant dense<0.000000e+00> : vector<64xf32>
      %27 = vector.multi_reduction <add>, %26, %cst_24 [1] : vector<64x128xf32> to vector<64xf32>
      %28 = vector.shape_cast %27 : vector<64xf32> to vector<64x1xf32>
      %29 = vector.broadcast %28 : vector<64x1xf32> to vector<64x128xf32>
      %30 = arith.mulf %29, %23 : vector<64x128xf32>
      %cst_25 = arith.constant dense<0.000000e+00> : vector<128xf32>
      %31 = vector.multi_reduction <add>, %30, %cst_25 [0] : vector<64x128xf32> to vector<128xf32>
      %32 = vector.shape_cast %31 : vector<128xf32> to vector<1x128xf32>
      %33 = arith.addf %32, %24 : vector<1x128xf32>
      %34 = vector.shape_cast %33 : vector<1x128xf32> to vector<1x128xf32>
      %35 = vector.broadcast %34 : vector<1x128xf32> to vector<8x128xf32>
      %c0_26 = arith.constant 0 : index
      %c0_27 = arith.constant 0 : index
      %c0_28 = arith.constant 0 : index
      %36 = vector.load %arg7[%c0_26, %c0_27, %c0_28] : memref<1x8x128xf32, #tpu.memory_space<vmem>>, vector<1x8x128xf32>
      %37 = vector.shape_cast %36 : vector<1x8x128xf32> to vector<8x128xf32>
      %38 = vector.shape_cast %35 : vector<8x128xf32> to vector<1x8x128xf32>
      tpu.vector_store %arg7[%c0_26, %c0_27, %c0_28], %38 {strides = array<i32>} : memref<1x8x128xf32, #tpu.memory_space<vmem>>, vector<1x8x128xf32>,
    } else {
    }
    return
  }
  func.func @transform_0(%arg0: i32, %arg1: i32) -> (i32, i32, i32) {
    %c0_i32 = arith.constant 0 : i32
    %c0_i32_0 = arith.constant 0 : i32
    return %arg0, %c0_i32, %arg1 : i32, i32, i32
  }
  func.func @transform_1(%arg0: i32, %arg1: i32) -> (i32, i32) {
    %c0_i32 = arith.constant 0 : i32
    %c0_i32_0 = arith.constant 0 : i32
    %c0_i32_1 = arith.constant 0 : i32
    return %c0_i32, %c0_i32_0 : i32, i32
  }
  func.func @transform_2(%arg0: i32, %arg1: i32) -> (i32, i32) {
    %c0_i32 = arith.constant 0 : i32
    %c0_i32_0 = arith.constant 0 : i32
    %c0_i32_1 = arith.constant 0 : i32
    return %c0_i32, %c0_i32_0 : i32, i32
  }
  func.func @transform_3(%arg0: i32, %arg1: i32) -> (i32, i32) {
    %c0_i32 = arith.constant 0 : i32
    %c0_i32_0 = arith.constant 0 : i32
    %c0_i32_1 = arith.constant 0 : i32
    return %c0_i32, %c0_i32_0 : i32, i32
  }
  func.func @transform_4(%arg0: i32, %arg1: i32) -> (i32, i32) {
    %c0_i32 = arith.constant 0 : i32
    %c0_i32_0 = arith.constant 0 : i32
    %c0_i32_1 = arith.constant 0 : i32
    return %c0_i32, %c0_i32_0 : i32, i32
  }
  func.func @transform_5(%arg0: i32, %arg1: i32) -> (i32, i32, i32) {
    %c0_i32 = arith.constant 0 : i32
    %c0_i32_0 = arith.constant 0 : i32
    %c0_i32_1 = arith.constant 0 : i32
    return %arg0, %c0_i32, %c0_i32_0 : i32, i32, i32
  }
}

</mosaic_0001>

<llo_original>
// kernel: tpu_custom_call.1
$region0: #{tpu_custom_call.1}
  #allocation0 [shape = 'u32[]', space=smem, size = 0x4, offset = 0x4, fixed_abs, tag = 'smem constant byte address 0x4 - core index']
  #allocation1 [shape = 'u32[144,128]{1,0:T(1,128)}', space=vmem, size = 0x12000, scoped, tag = 'internal scratch']
  #allocation2 [shape = 'f32[1,64,128]{2,1,0:T(8,128)}', space=vmem, size = 0x8000, scoped, tag = 'scratch operand']
  %s0 = inlined_call_operand.vmem [shape: f32[2,4,256], index: 0, kind: input, shape index: {}]
  %s1 = inlined_call_operand.vmem [shape: f32[64,4], index: 1, kind: input, shape index: {}]
  %s2 = inlined_call_operand.vmem [shape: f32[64,1], index: 2, kind: input, shape index: {}]
  %s3 = inlined_call_operand.vmem [shape: f32[64,128], index: 3, kind: input, shape index: {}]
  %s4 = inlined_call_operand.vmem [shape: f32[1,128], index: 4, kind: input, shape index: {}]
  %s5 = inlined_call_operand.hbm [shape: f32[2,8,128], index: 5, kind: output, shape index: {}]
  %s6 = sld [smem:[#allocation0]]
  $region61: #{tpu_custom_call.1} parent=0
    _
  %s8 = ssub.s32 1, %s6
  %s9 = scalar_select 0, %s8, %s6
  $region1: #{tpu_custom_call.1} parent=0
    #allocation3 [shape = 'u8[8192]{0}', space=vmem, size = 0x2000, scoped, tag = 'output window, operand 0']
    #allocation4 [shape = 's32[2]{0}', space=sflag, size = 0x8, scoped, tag = 'scoped memory for tpu_custom_call.1']
    %10 = vsyncpa [#allocation4], 0
    %s11 = scalar_lea.sflag [#allocation4], 1
    %12 = vsyncpa %s11, 0
    loop: start=0, step=1, limit=6
    $region2: #{tpu_custom_call.1} parent=1 // loop_pre_header
      _
    $region3: #{tpu_custom_call.1} parent=1 // loop_header
      %s14 = sphi 0, %s18
      %p15 = scmp.ge.s32.totalorder %s14, 6
      %s21 = sphi 0, %s33
      %s22 = sphi 0, %s29
      %s23 = sphi 0, %s21
      %s24 = sphi 0, %s22
      %s25 = sphi 0, %s23
      %s26 = sphi 0, %s24
      %s38 = sphi 0, %s40
      %s41 = sphi 0, %s38
      %s42 = sphi 0, %s41
      %s58 = sphi 0, %s42
      %s62 = sphi 0, %s62
      %s64 = sphi 0, %s62
      %s65 = sphi 0, %s64
      %s79 = sphi 0, %s65
      %s83 = sphi 0, %s83
      %s85 = sphi 0, %s83
      %s86 = sphi 0, %s85
      %s100 = sphi 0, %s86
      %s104 = sphi 0, %s104
      %s106 = sphi 0, %s104
      %s107 = sphi 0, %s106
      %s121 = sphi 0, %s107
      %s125 = sphi 0, %s125
      %s127 = sphi 0, %s125
      %s128 = sphi 0, %s127
      %s142 = sphi 0, %s128
      %s148 = sphi 0, %s150
      %s151 = sphi 0, %s148
      %s152 = sphi 0, %s151
      %s168 = sphi 0, %s152
    $region4: #{tpu_custom_call.1} parent=1 // loop_header_branch
      %17 = sbr.rel (%p15) target = $region8
    $region5: #{tpu_custom_call.1} parent=1 // loop_body
      %s19 = ssub.s32 %s14, 1
      %s20 = ssub.s32 %s14, 2
      %s27 = sadd.s32 1, %s22
      %p28 = scmp.ge.s32.totalorder %s27, 2
      %s29 = scalar_select %p28, 0, %s27
      %s30 = sadd.s32 1, %s21
      %s31 = scalar_select %p28, %s30, %s21
      %p32 = scmp.ge.s32.totalorder %s31, 2
      %s33 = scalar_select %p32, 0, %s31
      %s34 = ssub.s32 %s21, %s33
      %s35 = ssub.s32 %s22, %s29
      %s36 = sor.u32 %s34, %s35
      %p37 = scmp.eq.s32.totalorder %s36, 0
      %s39 = sadd.s32 %s38, 1
      %s40 = scalar_select %p37, %s38, %s39
      %p43 = pneg %p37
      %p44 = scmp.eq.s32.totalorder %s14, 3
      %p45 = por %p43, %p44
      %p46 = scmp.ne.s32.totalorder %s38, %s41
      %p47 = scmp.eq.s32.totalorder %s14, 0
      %p48 = por %p46, %p47
      %p49 = scmp.ne.s32.totalorder %s38, %s41
      %p50 = scmp.eq.s32.totalorder %s19, 3
      %p51 = por %p49, %p50
      %p52 = scmp.ne.s32.totalorder %s41, %s42
      %p53 = scmp.eq.s32.totalorder %s19, 0
      %p54 = por %p52, %p53
      %p55 = scmp.ne.s32.totalorder %s41, %s42
      %p56 = scmp.eq.s32.totalorder %s20, 3
      %p57 = por %p55, %p56
      %p59 = scmp.ne.s32.totalorder %s42, %s58
      %p60 = scmp.eq.s32.totalorder %s20, 0
      %p61 = por %p59, %p60
      %s63 = sadd.s32 %s62, 1
      %p66 = scmp.eq.s32.totalorder %s14, 3
      %p67 = scmp.ne.s32.totalorder %s62, %s64
      %p68 = scmp.eq.s32.totalorder %s14, 0
      %p69 = por %p67, %p68
      %p70 = scmp.ne.s32.totalorder %s62, %s64
      %p71 = scmp.eq.s32.totalorder %s19, 3
      %p72 = por %p70, %p71
      %p73 = scmp.ne.s32.totalorder %s64, %s65
      %p74 = scmp.eq.s32.totalorder %s19, 0
      %p75 = por %p73, %p74
      %p76 = scmp.ne.s32.totalorder %s64, %s65
      %p77 = scmp.eq.s32.totalorder %s20, 3
      %p78 = por %p76, %p77
      %p80 = scmp.ne.s32.totalorder %s65, %s79
      %p81 = scmp.eq.s32.totalorder %s20, 0
      %p82 = por %p80, %p81
      %s84 = sadd.s32 %s83, 1
      %p87 = scmp.eq.s32.totalorder %s14, 3
      %p88 = scmp.ne.s32.totalorder %s83, %s85
      %p89 = scmp.eq.s32.totalorder %s14, 0
      %p90 = por %p88, %p89
      %p91 = scmp.ne.s32.totalorder %s83, %s85
      %p92 = scmp.eq.s32.totalorder %s19, 3
      %p93 = por %p91, %p92
      %p94 = scmp.ne.s32.totalorder %s85, %s86
      %p95 = scmp.eq.s32.totalorder %s19, 0
      %p96 = por %p94, %p95
      %p97 = scmp.ne.s32.totalorder %s85, %s86
      %p98 = scmp.eq.s32.totalorder %s20, 3
      %p99 = por %p97, %p98
      %p101 = scmp.ne.s32.totalorder %s86, %s100
      %p102 = scmp.eq.s32.totalorder %s20, 0
      %p103 = por %p101, %p102
      %s105 = sadd.s32 %s104, 1
      %p108 = scmp.eq.s32.totalorder %s14, 3
      %p109 = scmp.ne.s32.totalorder %s104, %s106
      %p110 = scmp.eq.s32.totalorder %s14, 0
      %p111 = por %p109, %p110
      %p112 = scmp.ne.s32.totalorder %s104, %s106
      %p113 = scmp.eq.s32.totalorder %s19, 3
      %p114 = por %p112, %p113
      %p115 = scmp.ne.s32.totalorder %s106, %s107
      %p116 = scmp.eq.s32.totalorder %s19, 0
      %p117 = por %p115, %p116
      %p118 = scmp.ne.s32.totalorder %s106, %s107
      %p119 = scmp.eq.s32.totalorder %s20, 3
      %p120 = por %p118, %p119
      %p122 = scmp.ne.s32.totalorder %s107, %s121
      %p123 = scmp.eq.s32.totalorder %s20, 0
      %p124 = por %p122, %p123
      %s126 = sadd.s32 %s125, 1
      %p129 = scmp.eq.s32.totalorder %s14, 3
      %p130 = scmp.ne.s32.totalorder %s125, %s127
      %p131 = scmp.eq.s32.totalorder %s14, 0
      %p132 = por %p130, %p131
      %p133 = scmp.ne.s32.totalorder %s125, %s127
      %p134 = scmp.eq.s32.totalorder %s19, 3
      %p135 = por %p133, %p134
      %p136 = scmp.ne.s32.totalorder %s127, %s128
      %p137 = scmp.eq.s32.totalorder %s19, 0
      %p138 = por %p136, %p137
      %p139 = scmp.ne.s32.totalorder %s127, %s128
      %p140 = scmp.eq.s32.totalorder %s20, 3
      %p141 = por %p139, %p140
      %p143 = scmp.ne.s32.totalorder %s128, %s142
      %p144 = scmp.eq.s32.totalorder %s20, 0
      %p145 = por %p143, %p144
      %s146 = ssub.s32 %s21, %s33
      %p147 = scmp.eq.s32.totalorder %s146, 0
      %s149 = sadd.s32 %s148, 1
      %s150 = scalar_select %p147, %s148, %s149
      %p153 = pneg %p147
      %p154 = scmp.eq.s32.totalorder %s14, 3
      %p155 = por %p153, %p154
      %p156 = scmp.ne.s32.totalorder %s148, %s151
      %p157 = scmp.eq.s32.totalorder %s14, 0
      %p158 = por %p156, %p157
      %p159 = scmp.ne.s32.totalorder %s148, %s151
      %p160 = scmp.eq.s32.totalorder %s19, 3
      %p161 = por %p159, %p160
      %p162 = scmp.ne.s32.totalorder %s151, %s152
      %p163 = scmp.eq.s32.totalorder %s19, 0
      %p164 = por %p162, %p163
      %p165 = scmp.ne.s32.totalorder %s151, %s152
      %p166 = scmp.eq.s32.totalorder %s20, 3
      %p167 = por %p165, %p166
      %p169 = scmp.ne.s32.totalorder %s152, %s168
      %p170 = scmp.eq.s32.totalorder %s20, 0
      %p171 = por %p169, %p170
      %p172 = scmp.le.s32.totalorder 1, %s14
      %p173 = scmp.lt.s32.totalorder %s14, 5
      %p174 = pnand %p172, %p173
      %p175 = pneg %p174
      // Predicated region
      $region9: #{tpu_custom_call.1} parent=5 // pred_check
        _
      $region10: #{tpu_custom_call.1} parent=5 // pred_check_branch
        %177 = sbr.rel (%p174) target = $region12
      $region11: #{tpu_custom_call.1} parent=5 // pred_region
        %s178 = ssub.s32 %s14, 1
        // Predicated region
        $region13: #{tpu_custom_call.1} parent=11 // pred_check
          %p179 = pneg %p75
        $region14: #{tpu_custom_call.1} parent=11 // pred_check_branch
          %181 = sbr.rel (%p179) target = $region16
        $region15: #{tpu_custom_call.1} parent=11 // pred_region
          _
        $region16: #{tpu_custom_call.1} parent=11 // pred_fallthru
          _
        // Predicated region
        $region17: #{tpu_custom_call.1} parent=11 // pred_check
          %p182 = pneg %p96
        $region18: #{tpu_custom_call.1} parent=11 // pred_check_branch
          %184 = sbr.rel (%p182) target = $region20
        $region19: #{tpu_custom_call.1} parent=11 // pred_region
          _
        $region20: #{tpu_custom_call.1} parent=11 // pred_fallthru
          _
        // Predicated region
        $region21: #{tpu_custom_call.1} parent=11 // pred_check
          %p185 = pneg %p117
        $region22: #{tpu_custom_call.1} parent=11 // pred_check_branch
          %187 = sbr.rel (%p185) target = $region24
        $region23: #{tpu_custom_call.1} parent=11 // pred_region
          _
        $region24: #{tpu_custom_call.1} parent=11 // pred_fallthru
          _
        // Predicated region
        $region25: #{tpu_custom_call.1} parent=11 // pred_check
          %p188 = pneg %p138
        $region26: #{tpu_custom_call.1} parent=11 // pred_check_branch
          %190 = sbr.rel (%p188) target = $region28
        $region27: #{tpu_custom_call.1} parent=11 // pred_region
          _
        $region28: #{tpu_custom_call.1} parent=11 // pred_fallthru
          _
      $region12: #{tpu_custom_call.1} parent=5 // pred_fallthru
        _
      %p191 = scmp.lt.s32.totalorder %s14, 4
      // Predicated region
      $region29: #{tpu_custom_call.1} parent=5 // pred_check
        %p192 = pneg %p191
      $region30: #{tpu_custom_call.1} parent=5 // pred_check_branch
        %194 = sbr.rel (%p192) target = $region32
      $region31: #{tpu_custom_call.1} parent=5 // pred_region
        // Predicated region
        $region33: #{tpu_custom_call.1} parent=31 // pred_check
          %p195 = pneg %p48
        $region34: #{tpu_custom_call.1} parent=31 // pred_check_branch
          %197 = sbr.rel (%p195) target = $region36
        $region35: #{tpu_custom_call.1} parent=31 // pred_region
          %p198 = scmp.lt.s32.totalorder %s21, 1
          %s199 = scalar_select %p198, %s21, 1
          %p200 = scmp.lt.s32.totalorder %s22, 1
          %s201 = scalar_select %p200, %s22, 1
          %s202 = smul.addr %s199, 2
          %s203 = sadd.s32 %s201, %s202
          %s204 = smul.addr %s203, 4
          %s205 = scalar_lea.vmem %s0, %s204
        $region36: #{tpu_custom_call.1} parent=31 // pred_fallthru
          _
      $region32: #{tpu_custom_call.1} parent=5 // pred_fallthru
        _
      %p206 = scmp.le.s32.totalorder 1, %s14
      %p207 = scmp.lt.s32.totalorder %s14, 5
      %p208 = pnand %p206, %p207
      %p209 = pneg %p208
      // Predicated region
      $region37: #{tpu_custom_call.1} parent=5 // pred_check
        _
      $region38: #{tpu_custom_call.1} parent=5 // pred_check_branch
        %211 = sbr.rel (%p208) target = $region40
      $region39: #{tpu_custom_call.1} parent=5 // pred_region
        %s212 = ssub.s32 %s14, 1
        %p213 = scmp.lt.s32.totalorder %s23, 1
        %s214 = scalar_select %p213, %s23, 1
        %p215 = scmp.lt.s32.totalorder %s24, 1
        %s216 = scalar_select %p215, %s24, 1
        %s217 = smul.addr %s214, 2
        %s218 = sadd.s32 %s216, %s217
        %s219 = smul.addr %s218, 4
        %s220 = scalar_lea.vmem %s0, %s219
        %p221 = pneg %p54
        %p222 = pneg %p51
        %p223 = pneg %p75
        %p224 = pneg %p72
        %p225 = pneg %p96
        %p226 = pneg %p93
        %p227 = pneg %p117
        %p228 = pneg %p114
        %p229 = pneg %p138
        %p230 = pneg %p135
        %p231 = pneg %p164
        %p232 = pneg %p161
        %s233 = sand.u32 %s151, 1
        %s234 = scalar_lea.sflag [#allocation4], %s233
        %s235 = sand.u32 %s151, 1
        %s236 = smul.addr %s235, 8
        %s237 = scalar_lea.vmem [#allocation3], %s236
        %p238 = scmp.lt.s32.totalorder %s23, 1
        %s239 = scalar_select %p238, %s23, 1
        %p240 = scmp.lt.s32.totalorder %s24, 1
        %s241 = scalar_select %p240, %s24, 1
        %s242 = smul.addr %s239, 2
        %s243 = sadd.s32 %s241, %s242
        %s244 = smul.addr %s243, 4
        %s245 = scalar_lea.vmem %s0, %s244
        %p246 = scmp.eq.s32.totalorder %s24, 0
        // Predicated region
        $region41: #{tpu_custom_call.1} parent=39 // pred_check
          %p247 = pneg %p246
        $region42: #{tpu_custom_call.1} parent=39 // pred_check_branch
          %249 = sbr.rel (%p247) target = $region44
        $region43: #{tpu_custom_call.1} parent=39 // pred_region
          %250 = vst [vmem:[#allocation2] sm:$0xff] 0.0
          %251 = vst [vmem:[#allocation2 + $0x8] sm:$0xff] 0.0
          %252 = vst [vmem:[#allocation2 + $0x10] sm:$0xff] 0.0
          %253 = vst [vmem:[#allocation2 + $0x18] sm:$0xff] 0.0
          %254 = vst [vmem:[#allocation2 + $0x20] sm:$0xff] 0.0
          %255 = vst [vmem:[#allocation2 + $0x28] sm:$0xff] 0.0
          %256 = vst [vmem:[#allocation2 + $0x30] sm:$0xff] 0.0
          %257 = vst [vmem:[#allocation2 + $0x38] sm:$0xff] 0.0
        $region44: #{tpu_custom_call.1} parent=39 // pred_fallthru
          _
        %v258 = vld [vmem:[%s1] sm:$0xff]
        %v259 = vld [vmem:[%s1 + $0x8] sm:$0xff]
        %v260 = vld [vmem:[%s1 + $0x10] sm:$0xff]
        %v261 = vld [vmem:[%s1 + $0x18] sm:$0xff]
        %v262 = vld [vmem:[%s1 + $0x20] sm:$0xff]
        %v263 = vld [vmem:[%s1 + $0x28] sm:$0xff]
        %v264 = vld [vmem:[%s1 + $0x30] sm:$0xff]
        %v265 = vld [vmem:[%s1 + $0x38] sm:$0xff]
        %v266 = vld [vmem:[%s2] sm:$0xff]
        %v267 = vld [vmem:[%s2 + $0x8] sm:$0xff]
        %v268 = vld [vmem:[%s2 + $0x10] sm:$0xff]
        %v269 = vld [vmem:[%s2 + $0x18] sm:$0xff]
        %v270 = vld [vmem:[%s2 + $0x20] sm:$0xff]
        %v271 = vld [vmem:[%s2 + $0x28] sm:$0xff]
        %v272 = vld [vmem:[%s2 + $0x30] sm:$0xff]
        %v273 = vld [vmem:[%s2 + $0x38] sm:$0xff]
        %v274 = vld [vmem:[%s245] sm:$0xf]
        %276 = vset.pattern.permute.xlu0 0
        %277 = vperm.xlu0 %276, %v266
        %v278 = vpop.permute.xlu0 %277
        %281 = vset.pattern.permute.xlu0 0
        %282 = vperm.xlu0 %281, %v267
        %v283 = vpop.permute.xlu0 %282
        %286 = vset.pattern.permute.xlu0 0
        %287 = vperm.xlu0 %286, %v268
        %v288 = vpop.permute.xlu0 %287
        %291 = vset.pattern.permute.xlu0 0
        %292 = vperm.xlu0 %291, %v269
        %v293 = vpop.permute.xlu0 %292
        %296 = vset.pattern.permute.xlu0 0
        %297 = vperm.xlu0 %296, %v270
        %v298 = vpop.permute.xlu0 %297
        %301 = vset.pattern.permute.xlu0 0
        %302 = vperm.xlu0 %301, %v271
        %v303 = vpop.permute.xlu0 %302
        %306 = vset.pattern.permute.xlu0 0
        %307 = vperm.xlu0 %306, %v272
        %v308 = vpop.permute.xlu0 %307
        %311 = vset.pattern.permute.xlu0 0
        %312 = vperm.xlu0 %311, %v273
        %v313 = vpop.permute.xlu0 %312
        %vm315 = vcmask 31744
        %v317 = vsel %vm315, %v258, 0
        %v320 = vsel %vm315, %v259, 0
        %v323 = vsel %vm315, %v260, 0
        %v326 = vsel %vm315, %v261, 0
        %v329 = vsel %vm315, %v262, 0
        %v332 = vsel %vm315, %v263, 0
        %v335 = vsel %vm315, %v264, 0
        %v338 = vsel %vm315, %v265, 0
        %vm340 = vcmask 1043456
        %v342 = vsel %vm340, %v274, 0
        %344 = vmatprep.subr.mxu0 0.0
        %345 = vmatpush1.msra.mxu0 %v342
        %346 = vmatprep.subr.mxu0 0.0
        %347 = vmatpush1.msra.mxu0 0.0
        %348 = vmatprep.subr.mxu0 0.0
        %349 = vmatpush1.msra.mxu0 0.0
        %350 = vmatprep.subr.mxu0 0.0
        %351 = vmatpush1.msra.mxu0 0.0
        %352 = vmatprep.subr.mxu0 0.0
        %353 = vmatpush1.msra.mxu0 0.0
        %354 = vmatprep.subr.mxu0 0.0
        %355 = vmatpush1.msra.mxu0 0.0
        %356 = vmatprep.subr.mxu0 0.0
        %357 = vmatpush1.msra.mxu0 0.0
        %358 = vmatprep.subr.mxu0 0.0
        %359 = vmatpush1.msra.mxu0 0.0
        %360 = vmatprep.subr.mxu0 0.0
        %361 = vmatpush1.msra.mxu0 0.0
        %362 = vmatprep.subr.mxu0 0.0
        %363 = vmatpush1.msra.mxu0 0.0
        %364 = vmatprep.subr.mxu0 0.0
        %365 = vmatpush1.msra.mxu0 0.0
        %366 = vmatprep.subr.mxu0 0.0
        %367 = vmatpush1.msra.mxu0 0.0
        %368 = vmatprep.subr.mxu0 0.0
        %369 = vmatpush1.msra.mxu0 0.0
        %370 = vmatprep.subr.mxu0 0.0
        %371 = vmatpush1.msra.mxu0 0.0
        %372 = vmatprep.subr.mxu0 0.0
        %373 = vmatpush1.msra.mxu0 0.0
        %374 = vmatprep.subr.mxu0 0.0
        %375 = vmatpush1.msra.mxu0 0.0
        %376 = vmatprep.subr.mxu0 0.0
        %377 = vmatpush1.msra.mxu0 0.0
        %378 = vmatprep.subr.mxu0 0.0
        %379 = vmatpush1.msra.mxu0 0.0
        %380 = vmatprep.subr.mxu0 0.0
        %381 = vmatpush1.msra.mxu0 0.0
        %382 = vmatprep.subr.mxu0 0.0
        %383 = vmatpush1.msra.mxu0 0.0
        %384 = vmatprep.subr.mxu0 0.0
        %385 = vmatpush1.msra.mxu0 0.0
        %386 = vmatprep.subr.mxu0 0.0
        %387 = vmatpush1.msra.mxu0 0.0
        %388 = vmatprep.subr.mxu0 0.0
        %389 = vmatpush1.msra.mxu0 0.0
        %390 = vmatprep.subr.mxu0 0.0
        %391 = vmatpush1.msra.mxu0 0.0
        %392 = vmatprep.subr.mxu0 0.0
        %393 = vmatpush1.msra.mxu0 0.0
        %394 = vmatprep.subr.mxu0 0.0
        %395 = vmatpush1.msra.mxu0 0.0
        %396 = vmatprep.subr.mxu0 0.0
        %397 = vmatpush1.msra.mxu0 0.0
        %398 = vmatprep.subr.mxu0 0.0
        %399 = vmatpush1.msra.mxu0 0.0
        %400 = vmatprep.subr.mxu0 0.0
        %401 = vmatpush1.msra.mxu0 0.0
        %402 = vmatprep.subr.mxu0 0.0
        %403 = vmatpush1.msra.mxu0 0.0
        %404 = vmatprep.subr.mxu0 0.0
        %405 = vmatpush1.msra.mxu0 0.0
        %406 = vmatprep.subr.mxu0 0.0
        %407 = vmatpush1.msra.mxu0 0.0
        %408 = vmatprep.mubr.f32.mxu0 0.0
        %409 = vmatmul.mubr.f32.gmra.mrb[0].mxu0 %v317
        %v410 = vpop.f32.mrb[0].mxu0
        %v411 = vadd.f32 %v278, %v410
        %v412 = vpop.f32.mrb[0].mxu0
        %413 = vmatprep.mubr.f32.mxu0 0.0
        %414 = vmatmul.mubr.f32.gmra.mrb[0].mxu0 %v320
        %v415 = vpop.f32.mrb[0].mxu0
        %v416 = vadd.f32 %v283, %v415
        %v417 = vpop.f32.mrb[0].mxu0
        %418 = vmatprep.mubr.f32.mxu0 0.0
        %419 = vmatmul.mubr.f32.gmra.mrb[0].mxu0 %v323
        %v420 = vpop.f32.mrb[0].mxu0
        %v421 = vadd.f32 %v288, %v420
        %v422 = vpop.f32.mrb[0].mxu0
        %423 = vmatprep.mubr.f32.mxu0 0.0
        %424 = vmatmul.mubr.f32.gmra.mrb[0].mxu0 %v326
        %v425 = vpop.f32.mrb[0].mxu0
        %v426 = vadd.f32 %v293, %v425
        %v427 = vpop.f32.mrb[0].mxu0
        %428 = vmatprep.mubr.f32.mxu0 0.0
        %429 = vmatmul.mubr.f32.gmra.mrb[0].mxu0 %v329
        %v430 = vpop.f32.mrb[0].mxu0
        %v431 = vadd.f32 %v298, %v430
        %v432 = vpop.f32.mrb[0].mxu0
        %433 = vmatprep.mubr.f32.mxu0 0.0
        %434 = vmatmul.mubr.f32.gmra.mrb[0].mxu0 %v332
        %v435 = vpop.f32.mrb[0].mxu0
        %v436 = vadd.f32 %v303, %v435
        %v437 = vpop.f32.mrb[0].mxu0
        %438 = vmatprep.mubr.f32.mxu0 0.0
        %439 = vmatmul.mubr.f32.gmra.mrb[0].mxu0 %v335
        %v440 = vpop.f32.mrb[0].mxu0
        %v441 = vadd.f32 %v308, %v440
        %v442 = vpop.f32.mrb[0].mxu0
        %443 = vmatprep.mubr.f32.mxu0 0.0
        %444 = vmatmul.mubr.f32.gmra.mrb[0].mxu0 %v338
        %v445 = vpop.f32.mrb[0].mxu0
        %v446 = vadd.f32 %v313, %v445
        %v447 = vpop.f32.mrb[0].mxu0
        %448 = vdwg.mxu0
        %v449 = vmax.f32 %v411, 0.0
        %v450 = vmax.f32 %v416, 0.0
        %v451 = vmax.f32 %v421, 0.0
        %v452 = vmax.f32 %v426, 0.0
        %v453 = vmax.f32 %v431, 0.0
        %v454 = vmax.f32 %v436, 0.0
        %v455 = vmax.f32 %v441, 0.0
        %v456 = vmax.f32 %v446, 0.0
        %v457 = vadd.f32 %v449, 0.0
        %v458 = vadd.f32 %v450, 0.0
        %v459 = vadd.f32 %v451, 0.0
        %v460 = vadd.f32 %v452, 0.0
        %v461 = vadd.f32 %v453, 0.0
        %v462 = vadd.f32 %v454, 0.0
        %v463 = vadd.f32 %v455, 0.0
        %v464 = vadd.f32 %v456, 0.0
        %v465 = vld [vmem:[#allocation2] sm:$0xff]
        %v466 = vld [vmem:[#allocation2 + $0x8] sm:$0xff]
        %v467 = vld [vmem:[#allocation2 + $0x10] sm:$0xff]
        %v468 = vld [vmem:[#allocation2 + $0x18] sm:$0xff]
        %v469 = vld [vmem:[#allocation2 + $0x20] sm:$0xff]
        %v470 = vld [vmem:[#allocation2 + $0x28] sm:$0xff]
        %v471 = vld [vmem:[#allocation2 + $0x30] sm:$0xff]
        %v472 = vld [vmem:[#allocation2 + $0x38] sm:$0xff]
        %v473 = vadd.f32 %v465, %v457
        %v474 = vadd.f32 %v466, %v458
        %v475 = vadd.f32 %v467, %v459
        %v476 = vadd.f32 %v468, %v460
        %v477 = vadd.f32 %v469, %v461
        %v478 = vadd.f32 %v470, %v462
        %v479 = vadd.f32 %v471, %v463
        %v480 = vadd.f32 %v472, %v464
        %481 = vst [vmem:[#allocation2] sm:$0xff] %v473
        %482 = vst [vmem:[#allocation2 + $0x8] sm:$0xff] %v474
        %483 = vst [vmem:[#allocation2 + $0x10] sm:$0xff] %v475
        %484 = vst [vmem:[#allocation2 + $0x18] sm:$0xff] %v476
        %485 = vst [vmem:[#allocation2 + $0x20] sm:$0xff] %v477
        %486 = vst [vmem:[#allocation2 + $0x28] sm:$0xff] %v478
        %487 = vst [vmem:[#allocation2 + $0x30] sm:$0xff] %v479
        %488 = vst [vmem:[#allocation2 + $0x38] sm:$0xff] %v480
        %p489 = scmp.eq.s32.totalorder %s24, 1
        // Predicated region
        $region45: #{tpu_custom_call.1} parent=39 // pred_check
          %p490 = pneg %p489
        $region46: #{tpu_custom_call.1} parent=39 // pred_check_branch
          %492 = sbr.rel (%p490) target = $region48
        $region47: #{tpu_custom_call.1} parent=39 // pred_region
          %v493 = vld [vmem:[%s3] sm:$0xff]
          %v494 = vld [vmem:[%s3 + $0x8] sm:$0xff]
          %v495 = vld [vmem:[%s3 + $0x10] sm:$0xff]
          %v496 = vld [vmem:[%s3 + $0x18] sm:$0xff]
          %v497 = vld [vmem:[%s3 + $0x20] sm:$0xff]
          %v498 = vld [vmem:[%s3 + $0x28] sm:$0xff]
          %v499 = vld [vmem:[%s3 + $0x30] sm:$0xff]
          %v500 = vld [vmem:[%s3 + $0x38] sm:$0xff]
          %v501 = vld [vmem:[%s4] sm:$0x1]
          %v502 = vld [vmem:[#allocation2] sm:$0xff]
          %v503 = vld [vmem:[#allocation2 + $0x8] sm:$0xff]
          %v504 = vld [vmem:[#allocation2 + $0x10] sm:$0xff]
          %v505 = vld [vmem:[#allocation2 + $0x18] sm:$0xff]
          %v506 = vld [vmem:[#allocation2 + $0x20] sm:$0xff]
          %v507 = vld [vmem:[#allocation2 + $0x28] sm:$0xff]
          %v508 = vld [vmem:[#allocation2 + $0x30] sm:$0xff]
          %v509 = vld [vmem:[#allocation2 + $0x38] sm:$0xff]
          %510 = vadd.xlane.f32.xlu0 %v502
          %v511 = vpop.xlane.xlu0 %510
          %512 = vadd.xlane.f32.xlu0 %v503
          %v513 = vpop.xlane.xlu0 %512
          %514 = vadd.xlane.f32.xlu0 %v504
          %v515 = vpop.xlane.xlu0 %514
          %516 = vadd.xlane.f32.xlu0 %v505
          %v517 = vpop.xlane.xlu0 %516
          %518 = vadd.xlane.f32.xlu0 %v506
          %v519 = vpop.xlane.xlu0 %518
          %520 = vadd.xlane.f32.xlu0 %v507
          %v521 = vpop.xlane.xlu0 %520
          %522 = vadd.xlane.f32.xlu0 %v508
          %v523 = vpop.xlane.xlu0 %522
          %524 = vadd.xlane.f32.xlu0 %v509
          %v525 = vpop.xlane.xlu0 %524
          %v526 = vmul.f32 %v511, %v493
          %v527 = vmul.f32 %v513, %v494
          %v528 = vmul.f32 %v515, %v495
          %v529 = vmul.f32 %v517, %v496
          %v530 = vmul.f32 %v519, %v497
          %v531 = vmul.f32 %v521, %v498
          %v532 = vmul.f32 %v523, %v499
          %v533 = vmul.f32 %v525, %v500
          %v534 = vadd.f32 %v526, %v527
          %v535 = vadd.f32 %v534, %v528
          %v536 = vadd.f32 %v535, %v529
          %v537 = vadd.f32 %v536, %v530
          %v538 = vadd.f32 %v537, %v531
          %v539 = vadd.f32 %v538, %v532
          %v540 = vadd.f32 %v539, %v533
          %v541 = vrot.slane %v540, 4
          %v542 = vadd.f32 %v540, %v541
          %v543 = vrot.slane %v542, 2
          %v544 = vadd.f32 %v542, %v543
          %v545 = vrot.slane %v544, 1
          %v546 = vadd.f32 %v544, %v545
          %v547 = vadd.f32 %v546, %v501
          %v548 = vlaneseq
          %v549 = vshrl.u32 %v548, 7
          %v550 = vsub.s32 0, %v549
          %v551 = vrot.slane %v547, %v550
          %552 = vst [vmem:[%s237] sm:$0xff] %v551
        $region48: #{tpu_custom_call.1} parent=39 // pred_fallthru
          _
        %s553 = sand.u32 %s151, 1
        %s554 = scalar_lea.sflag [#allocation4], %s553
        %s555 = sand.u32 %s151, 1
        %s556 = smul.addr %s555, 8
        %s557 = scalar_lea.vmem [#allocation3], %s556
        // Predicated region
        $region49: #{tpu_custom_call.1} parent=39 // pred_check
          %p558 = pneg %p161
        $region50: #{tpu_custom_call.1} parent=39 // pred_check_branch
          %560 = sbr.rel (%p558) target = $region52
        $region51: #{tpu_custom_call.1} parent=39 // pred_region
          %s562 = ssub.s32 128, 128
          %563 = vsyncadd %s554, %s562
          %s564 = smul.addr %s23, 128
          %s565 = scalar_lea.hbm %s5, %s564
          %s567 = sshll.u32 %s557, 4
          %s568 = int_to_ptr.vmem [resolvable:$true] %s567
          %570 = dma.vmem_to_hbm [thread:$0]  %s568, 128, %s565, %s554
        $region52: #{tpu_custom_call.1} parent=39 // pred_fallthru
          _
      $region40: #{tpu_custom_call.1} parent=5 // pred_fallthru
        _
      %p571 = scmp.le.s32.totalorder 2, %s14
      // Predicated region
      $region53: #{tpu_custom_call.1} parent=5 // pred_check
        %p572 = pneg %p571
      $region54: #{tpu_custom_call.1} parent=5 // pred_check_branch
        %574 = sbr.rel (%p572) target = $region56
      $region55: #{tpu_custom_call.1} parent=5 // pred_region
        %s575 = ssub.s32 %s14, 2
        // Predicated region
        $region57: #{tpu_custom_call.1} parent=55 // pred_check
          %p576 = pneg %p167
        $region58: #{tpu_custom_call.1} parent=55 // pred_check_branch
          %578 = sbr.rel (%p576) target = $region60
        $region59: #{tpu_custom_call.1} parent=55 // pred_region
          %s579 = sand.u32 %s152, 1
          %s580 = scalar_lea.sflag [#allocation4], %s579
          %s581 = sand.u32 %s152, 1
          %s582 = smul.addr %s581, 8
          %s583 = scalar_lea.vmem [#allocation3], %s582
          %584 = dma.done %s580, 128
        $region60: #{tpu_custom_call.1} parent=55 // pred_fallthru
          _
      $region56: #{tpu_custom_call.1} parent=5 // pred_fallthru
        _
    $region6: #{tpu_custom_call.1} parent=1 // loop_footer
      %s18 = sadd.s32 1, %s14
    $region7: #{tpu_custom_call.1} parent=1 // loop_footer_branch
      %13 = sbr.rel target = $region3
    $region8: #{tpu_custom_call.1} parent=1 // loop_exit
      _
    %585 = vsyncpa [#allocation4], 1
    %s586 = scalar_lea.sflag [#allocation4], 1
    %587 = vsyncpa %s586, 1

</llo_original>
